<compile_context>
chip_gen: v6e
topology: v6e:2x2x1
jax: 0.10.0
libtpu: 0.0.40
codegen_flags: <defaults>
</compile_context>

<pallas_src>
import jax
import jax.numpy as jnp
from jax.experimental import pallas as pl
from jax.experimental.pallas import tpu as pltpu


LANE = 128             # lane-dense last dim (full vreg width)
MAX_TILE_ROWS = 4096   # 4096 * 128 * 4 B = 2 MiB per tile buffer


def _scale_kernel(w_ref, a_ref, c_ref, d_ref):
    """Elementwise hot path: c = a*(w1*w2), d = a*(w1*w3).

    w_ref: SMEM (2,) f32 holding the folded scalars [w1*w2, w1*w3].
    a_ref / c_ref / d_ref: (tile_rows, 128) VMEM tiles.
    """
    a = a_ref[...]
    c_ref[...] = (a * w_ref[0]).astype(c_ref.dtype)
    d_ref[...] = (a * w_ref[1]).astype(d_ref.dtype)


def model_forward(a, w1, w2, w3):
    """JAX wrapper mirroring Model.forward.

    a:  any-shape float tensor (e.g. NCHW (B, C, H, W))
    w1, w2, w3: scalar parameters (shape (1,) like the nn.Parameter tensors)
    returns (c, d) with the same shape/dtype as a.
    """
    orig_shape = a.shape
    dtype = a.dtype
    n = a.size

    # ---- lane-dense 2-D view: (rows_padded, 128) ---------------------------
    rows = -(-n // LANE)                                  # ceil(n / LANE)
    tile_r = min(MAX_TILE_ROWS, ((rows + 7) // 8) * 8)    # (8,128)-aligned
    rows_padded = -(-rows // tile_r) * tile_r             # grid divides evenly
    n_padded = rows_padded * LANE

    flat = jnp.ravel(a)
    if n_padded != n:
        flat = jnp.pad(flat, (0, n_padded - n))
    a2d = flat.reshape(rows_padded, LANE)

    # ---- fold the scalar weights once (tiny scalar math, outside kernel) ---
    weights = jnp.concatenate(
        [(w1 * w2).astype(jnp.float32).reshape(1),
         (w1 * w3).astype(jnp.float32).reshape(1)]
    )  # shape (2,)

    # ---- pallas_call with a parallel 1-D row grid --------------------------
    grid = (rows_padded // tile_r,)
    block_spec = pl.BlockSpec((tile_r, LANE), lambda i: (i, 0))
    smem_spec = pl.BlockSpec(memory_space=pltpu.MemorySpace.SMEM)
    out_sd = jax.ShapeDtypeStruct((rows_padded, LANE), dtype)

    itemsize = jnp.dtype(dtype).itemsize
    cost = pl.CostEstimate(
        flops=2 * n_padded,                        # two muls per element
        transcendentals=0,
        bytes_accessed=3 * n_padded * itemsize,    # read a, write c and d
    )

    c2d, d2d = pl.pallas_call(
        _scale_kernel,
        out_shape=(out_sd, out_sd),
        grid=grid,
        in_specs=[smem_spec, block_spec],
        out_specs=(block_spec, block_spec),
        compiler_params=pltpu.CompilerParams(
            dimension_semantics=("parallel",),
            vmem_limit_bytes=32 * 1024 * 1024,
        ),
        cost_estimate=cost,
    )(weights, a2d)

    # ---- back to original layout -------------------------------------------
    c = c2d.reshape(-1)[:n].reshape(orig_shape)
    d = d2d.reshape(-1)[:n].reshape(orig_shape)
    return c, d


if __name__ == "__main__":
    key = jax.random.PRNGKey(0)

    # Deterministic parameters, matching Model.__init__ values.
    w1 = jnp.array([2.0], dtype=jnp.float32)
    w2 = jnp.array([3.0], dtype=jnp.float32)
    w3 = jnp.array([4.0], dtype=jnp.float32)

    # Small NCHW-style input.
    a = jax.random.normal(key, (2, 4, 16, 16), dtype=jnp.float32)

    c, d = model_forward(a, w1, w2, w3)
    jax.block_until_ready((c, d))

    # Reference check in plain JAX (matches PyTorch semantics).
    s_ref = a * w1[0]
    c_ref = s_ref * w2[0]
    d_ref = s_ref * w3[0]
    assert jnp.allclose(c, c_ref, atol=1e-6), "c mismatch"
    assert jnp.allclose(d, d_ref, atol=1e-6), "d mismatch"
    assert c.shape == a.shape and d.shape == a.shape
    assert c.dtype == a.dtype and d.dtype == a.dtype

    print("KERNEL_OK")
</pallas_src>

<mosaic_0001>
module attributes {stable_mosaic.version = 11 : i64} {
  func.func @_scale_kernel(%arg0: i32, %arg1: memref<2xf32, #tpu.memory_space<smem>>, %arg2: memref<16x128xf32, #tpu.memory_space<vmem>>, %arg3: memref<16x128xf32, #tpu.memory_space<vmem>>, %arg4: memref<16x128xf32, #tpu.memory_space<vmem>>) attributes {dimension_semantics = [#tpu.dimension_semantics<parallel>], iteration_bounds = array<i64: 1>, scalar_prefetch = 0 : i64, scratch_operands = 0 : i64, tpu.core_type = #tpu.core_type<tc>, window_params = [{transform_indices = @transform_0, window_bounds = array<i64: 2>}, {transform_indices = @transform_1, window_bounds = array<i64: 16, 128>}, {transform_indices = @transform_2, window_bounds = array<i64: 16, 128>}, {transform_indices = @transform_3, window_bounds = array<i64: 16, 128>}]} {
    %c0 = arith.constant 0 : index
    %c0_0 = arith.constant 0 : index
    %0 = vector.load %arg2[%c0, %c0_0] : memref<16x128xf32, #tpu.memory_space<vmem>>, vector<16x128xf32>
    %c0_1 = arith.constant 0 : index
    %1 = memref.load %arg1[%c0_1] : memref<2xf32, #tpu.memory_space<smem>>
    %2 = vector.broadcast %1 : f32 to vector<16x128xf32>
    %3 = arith.mulf %0, %2 : vector<16x128xf32>
    %c0_2 = arith.constant 0 : index
    %c0_3 = arith.constant 0 : index
    %4 = vector.load %arg3[%c0_2, %c0_3] : memref<16x128xf32, #tpu.memory_space<vmem>>, vector<16x128xf32>
    tpu.vector_store %arg3[%c0_2, %c0_3], %3 {strides = array<i32>} : memref<16x128xf32, #tpu.memory_space<vmem>>, vector<16x128xf32>,
    %c1 = arith.constant 1 : index
    %5 = memref.load %arg1[%c1] : memref<2xf32, #tpu.memory_space<smem>>
    %6 = vector.broadcast %5 : f32 to vector<16x128xf32>
    %7 = arith.mulf %0, %6 : vector<16x128xf32>
    %c0_4 = arith.constant 0 : index
    %c0_5 = arith.constant 0 : index
    %8 = vector.load %arg4[%c0_4, %c0_5] : memref<16x128xf32, #tpu.memory_space<vmem>>, vector<16x128xf32>
    tpu.vector_store %arg4[%c0_4, %c0_5], %7 {strides = array<i32>} : memref<16x128xf32, #tpu.memory_space<vmem>>, vector<16x128xf32>,
    return
  }
  func.func @transform_0(%arg0: i32) -> i32 {
    %c0_i32 = arith.constant 0 : i32
    %c0_i32_0 = arith.constant 0 : i32
    return %c0_i32 : i32
  }
  func.func @transform_1(%arg0: i32) -> (i32, i32) {
    %c0_i32 = arith.constant 0 : i32
    %c0_i32_0 = arith.constant 0 : i32
    return %arg0, %c0_i32 : i32, i32
  }
  func.func @transform_2(%arg0: i32) -> (i32, i32) {
    %c0_i32 = arith.constant 0 : i32
    %c0_i32_0 = arith.constant 0 : i32
    return %arg0, %c0_i32 : i32, i32
  }
  func.func @transform_3(%arg0: i32) -> (i32, i32) {
    %c0_i32 = arith.constant 0 : i32
    %c0_i32_0 = arith.constant 0 : i32
    return %arg0, %c0_i32 : i32, i32
  }
}

</mosaic_0001>

<llo_original>
// kernel: tpu_custom_call.1
$region0: #{tpu_custom_call.1}
  #allocation0 [shape = 'u32[]', space=smem, size = 0x4, offset = 0x4, fixed_abs, tag = 'smem constant byte address 0x4 - core index']
  #allocation1 [shape = 'u32[144,128]{1,0:T(1,128)}', space=vmem, size = 0x12000, scoped, tag = 'internal scratch']
  %s0 = inlined_call_operand.hbm [shape: f32[2], index: 0, kind: input, shape index: {}]
  %s1 = inlined_call_operand.hbm [shape: f32[16,128], index: 1, kind: input, shape index: {}]
  %s2 = inlined_call_operand.hbm [shape: f32[16,128], index: 2, kind: output, shape index: {0}]
  %s3 = inlined_call_operand.hbm [shape: f32[16,128], index: 3, kind: output, shape index: {1}]
  %4 = xla_tuple %s2, %s3
  %s5 = sld [smem:[#allocation0]]
  $region34: #{tpu_custom_call.1} parent=0
    _
  %s7 = ssub.s32 1, %s5
  %s8 = scalar_select 0, %s7, %s5
  $region1: #{tpu_custom_call.1} parent=0
    #allocation2 [shape = 'u8[512]{0}', space=smem, size = 0x200, scoped, tag = 'input window, operand 0, single buffered']
    #allocation3 [shape = 's32[1]{0}', space=sflag, size = 0x4, scoped, tag = 'scoped memory for tpu_custom_call.1']
    #allocation4 [shape = 's32[1]{0}', space=sflag, size = 0x4, scoped, tag = 'scoped memory for tpu_custom_call.1']
    #allocation5 [shape = 's32[1]{0}', space=sflag, size = 0x4, scoped, tag = 'scoped memory for tpu_custom_call.1']
    #allocation6 [shape = 'u8[8192]{0}', space=vmem, size = 0x2000, scoped, tag = 'input window, operand 1, single buffered']
    #allocation7 [shape = 'u8[8192]{0}', space=vmem, size = 0x2000, scoped, tag = 'output window, operand 0, single buffered']
    #allocation8 [shape = 'u8[8192]{0}', space=vmem, size = 0x2000, scoped, tag = 'output window, operand 1, single buffered']
    #allocation9 [shape = 's32[1]{0}', space=sflag, size = 0x4, scoped, tag = 'scoped memory for tpu_custom_call.1']
    %9 = vsyncpa [#allocation5], 0
    %10 = vsyncpa [#allocation3], 0
    %11 = vsyncpa [#allocation4], 0
    %12 = vsyncpa [#allocation9], 0
    // Predicated region
    $region2: #{tpu_custom_call.1} parent=1 // pred_check
      _
    $region3: #{tpu_custom_call.1} parent=1 // pred_check_branch
      %14 = sbr.rel (0) target = $region5
    $region4: #{tpu_custom_call.1} parent=1 // pred_region
      %s16 = ssub.s32 16, 16
      %17 = vsyncadd [#allocation5], %s16
      %20 = dma.hbm_to_smem %s0, 16, [#allocation2], [#allocation5]
    $region5: #{tpu_custom_call.1} parent=1 // pred_fallthru
      _
    // Predicated region
    $region6: #{tpu_custom_call.1} parent=1 // pred_check
      _
    $region7: #{tpu_custom_call.1} parent=1 // pred_check_branch
      %22 = sbr.rel (0) target = $region9
    $region8: #{tpu_custom_call.1} parent=1 // pred_region
      %s24 = ssub.s32 256, 256
      %25 = vsyncadd [#allocation3], %s24
      %s26 = sshll.u32 [#allocation6], 4
      %s27 = int_to_ptr.vmem [resolvable:$true] %s26
      %32 = dma.hbm_to_vmem [thread:$0]  %s1, 256, %s27, [#allocation3], 128, 128, 8
    $region9: #{tpu_custom_call.1} parent=1 // pred_fallthru
      _
    // Predicated region
    $region10: #{tpu_custom_call.1} parent=1 // pred_check
      _
    $region11: #{tpu_custom_call.1} parent=1 // pred_check_branch
      %34 = sbr.rel (0) target = $region13
    $region12: #{tpu_custom_call.1} parent=1 // pred_region
      %35 = dma.done [#allocation5], 16
    $region13: #{tpu_custom_call.1} parent=1 // pred_fallthru
      _
    // Predicated region
    $region14: #{tpu_custom_call.1} parent=1 // pred_check
      _
    $region15: #{tpu_custom_call.1} parent=1 // pred_check_branch
      %37 = sbr.rel (0) target = $region17
    $region16: #{tpu_custom_call.1} parent=1 // pred_region
      %38 = dma.done [#allocation3], 256
    $region17: #{tpu_custom_call.1} parent=1 // pred_fallthru
      _
    %39 = sfence
    %v40 = vld [vmem:[#allocation6] sm:$0xff]
    %v41 = vld [vmem:[#allocation6 + $0x8] sm:$0xff]
    %s42 = sld [smem:[#allocation2]]
    %v43 = vstv %s42
    %v44 = vmul.f32 %v40, %v43
    %v45 = vmul.f32 %v41, %v43
    %46 = vst [vmem:[#allocation7] sm:$0xff] %v44
    %47 = vst [vmem:[#allocation7 + $0x8] sm:$0xff] %v45
    %s48 = sld [smem:[#allocation2 + $0x1]]
    %v49 = vstv %s48
    %v50 = vmul.f32 %v40, %v49
    %v51 = vmul.f32 %v41, %v49
    %52 = vst [vmem:[#allocation8] sm:$0xff] %v50
    %53 = vst [vmem:[#allocation8 + $0x8] sm:$0xff] %v51
    // Predicated region
    $region18: #{tpu_custom_call.1} parent=1 // pred_check
      _
    $region19: #{tpu_custom_call.1} parent=1 // pred_check_branch
      %55 = sbr.rel (0) target = $region21
    $region20: #{tpu_custom_call.1} parent=1 // pred_region
      %s57 = ssub.s32 256, 256
      %58 = vsyncadd [#allocation4], %s57
      %s59 = sshll.u32 [#allocation7], 4
      %s60 = int_to_ptr.vmem [resolvable:$true] %s59
      %65 = dma.vmem_to_hbm [thread:$0]  %s60, 256, %s2, [#allocation4], 128, 128, 8
    $region21: #{tpu_custom_call.1} parent=1 // pred_fallthru
      _
    // Predicated region
    $region22: #{tpu_custom_call.1} parent=1 // pred_check
      _
    $region23: #{tpu_custom_call.1} parent=1 // pred_check_branch
      %67 = sbr.rel (0) target = $region25
    $region24: #{tpu_custom_call.1} parent=1 // pred_region
      %s69 = ssub.s32 256, 256
      %70 = vsyncadd [#allocation9], %s69
      %s71 = sshll.u32 [#allocation8], 4
      %s72 = int_to_ptr.vmem [resolvable:$true] %s71
      %77 = dma.vmem_to_hbm [thread:$0]  %s72, 256, %s3, [#allocation9], 128, 128, 8
    $region25: #{tpu_custom_call.1} parent=1 // pred_fallthru
      _
    // Predicated region
    $region26: #{tpu_custom_call.1} parent=1 // pred_check
      _
    $region27: #{tpu_custom_call.1} parent=1 // pred_check_branch
      %79 = sbr.rel (0) target = $region29
    $region28: #{tpu_custom_call.1} parent=1 // pred_region
      %80 = dma.done [#allocation4], 256
    $region29: #{tpu_custom_call.1} parent=1 // pred_fallthru
      _
    // Predicated region
    $region30: #{tpu_custom_call.1} parent=1 // pred_check
      _
    $region31: #{tpu_custom_call.1} parent=1 // pred_check_branch
      %82 = sbr.rel (0) target = $region33
    $region32: #{tpu_custom_call.1} parent=1 // pred_region
      %83 = dma.done [#allocation9], 256
    $region33: #{tpu_custom_call.1} parent=1 // pred_fallthru
      _
    %84 = vsyncpa [#allocation3], 1
    %85 = vsyncpa [#allocation4], 1
    %86 = vsyncpa [#allocation9], 1
    %87 = vsyncpa [#allocation5], 1

</llo_original>
